<compile_context>
chip_gen: v6e
topology: v6e:2x2x1
jax: 0.10.0
libtpu: 0.0.40
codegen_flags: <defaults>
</compile_context>

<pallas_src>
import functools

import jax
import jax.numpy as jnp
from jax import lax
from jax.experimental import pallas as pl
from jax.experimental.pallas import tpu as pltpu


def _round_up(x, m):
    return (x + m - 1) // m * m


def _softword_kernel(ids_ref, lex_ref, w_ref, tok_tab_ref, lex_tab_ref, out_ref,
                     *, tile_r, n_sets, max_n, n_tok_pad, n_lex_pad,
                     token_dim, lexicon_dim, out_dim, out_dim_pad):
    # ---------------- token embedding: one-hot @ table on the MXU ----------
    ids = ids_ref[...]                                               # (tile_r, 1) int32
    tok_iota = lax.broadcasted_iota(jnp.int32, (tile_r, n_tok_pad), 1)
    oh_tok = (ids == tok_iota).astype(jnp.float32)                   # (tile_r, n_tok_pad)
    tok_out = jnp.dot(oh_tok, tok_tab_ref[...],
                      preferred_element_type=jnp.float32)            # (tile_r, token_dim)
    out_ref[:, :token_dim] = tok_out

    # ---------------- lexicon embeddings, one set at a time ----------------
    # 2D weighted-one-hot accumulate (lanes = lexicon vocab), then MXU matmul.
    lex_ids = lex_ref[...]                                           # (tile_r, n_sets*max_n)
    w = w_ref[...]                                                   # (tile_r, n_sets*max_n)
    lex_tab = lex_tab_ref[...]                                       # (n_lex_pad, lexicon_dim)
    lex_iota = lax.broadcasted_iota(jnp.int32, (tile_r, n_lex_pad), 1)

    for s in range(n_sets):
        acc = jnp.zeros((tile_r, n_lex_pad), jnp.float32)
        for m in range(max_n):
            c = s * max_n + m
            ids_c = lex_ids[:, c:c + 1]                              # (tile_r, 1)
            w_c = w[:, c:c + 1]                                      # (tile_r, 1)
            acc = acc + jnp.where(ids_c == lex_iota, w_c, 0.0)
        set_out = jnp.dot(acc, lex_tab,
                          preferred_element_type=jnp.float32)        # (tile_r, lexicon_dim)
        start = token_dim + s * lexicon_dim
        out_ref[:, start:start + lexicon_dim] = set_out

    # ---------------- zero the lane-padding columns -------------------------
    if out_dim_pad > out_dim:
        out_ref[:, out_dim:] = jnp.zeros((tile_r, out_dim_pad - out_dim),
                                         jnp.float32)


def softword_embedding(inputs, lexicons, weights, token_table, lexicon_table,
                       *, tile_rows=256):
    """Forward pass of SoftwordEmbedding ('static' token embeddings)."""
    B, S = inputs.shape
    _, _, n_sets, max_n = lexicons.shape
    n_tokens, token_dim = token_table.shape
    n_lexicons, lexicon_dim = lexicon_table.shape
    out_dim = token_dim + n_sets * lexicon_dim
    out_dim_pad = _round_up(out_dim, 128)

    # ---- row-flatten and pad rows to a multiple of the row tile ----
    R = B * S
    tile_r = tile_rows if R >= tile_rows else _round_up(R, 8)
    R_pad = _round_up(R, tile_r)

    ids = inputs.reshape(R, 1).astype(jnp.int32)
    lex = lexicons.reshape(R, n_sets * max_n).astype(jnp.int32)
    w = weights.reshape(R, n_sets * max_n).astype(jnp.float32)
    if R_pad > R:
        pad = R_pad - R
        ids = jnp.pad(ids, ((0, pad), (0, 0)))
        lex = jnp.pad(lex, ((0, pad), (0, 0)))
        w = jnp.pad(w, ((0, pad), (0, 0)))

    # ---- pad contraction dims (table rows) to multiples of 128 ----
    n_tok_pad = _round_up(n_tokens, 128)
    n_lex_pad = _round_up(n_lexicons, 128)
    tok_tab = jnp.pad(token_table.astype(jnp.float32),
                      ((0, n_tok_pad - n_tokens), (0, 0)))
    lex_tab = jnp.pad(lexicon_table.astype(jnp.float32),
                      ((0, n_lex_pad - n_lexicons), (0, 0)))

    kernel = functools.partial(
        _softword_kernel,
        tile_r=tile_r, n_sets=n_sets, max_n=max_n,
        n_tok_pad=n_tok_pad, n_lex_pad=n_lex_pad,
        token_dim=token_dim, lexicon_dim=lexicon_dim,
        out_dim=out_dim, out_dim_pad=out_dim_pad)

    grid = (R_pad // tile_r,)

    out = pl.pallas_call(
        kernel,
        out_shape=jax.ShapeDtypeStruct((R_pad, out_dim_pad), jnp.float32),
        grid_spec=pltpu.PrefetchScalarGridSpec(
            num_scalar_prefetch=0,
            grid=grid,
            in_specs=[
                pl.BlockSpec((tile_r, 1), lambda r: (r, 0)),
                pl.BlockSpec((tile_r, n_sets * max_n), lambda r: (r, 0)),
                pl.BlockSpec((tile_r, n_sets * max_n), lambda r: (r, 0)),
                # Tables are resident (constant index_map).
                pl.BlockSpec((n_tok_pad, token_dim), lambda r: (0, 0)),
                pl.BlockSpec((n_lex_pad, lexicon_dim), lambda r: (0, 0)),
            ],
            out_specs=pl.BlockSpec((tile_r, out_dim_pad), lambda r: (r, 0)),
        ),
        compiler_params=pltpu.CompilerParams(
            dimension_semantics=("parallel",)),
    )(ids, lex, w, tok_tab, lex_tab)

    # Strip row / lane padding, restore (B, S, out_dim).
    return out[:R, :out_dim].reshape(B, S, out_dim)


def _reference(inputs, lexicons, weights, token_table, lexicon_table):
    B, S = inputs.shape
    token_embeds = token_table[inputs]                               # (B,S,Dt)
    lex_embeds = lexicon_table[lexicons]                             # (B,S,n_sets,max_n,Dl)
    lex_embeds = lex_embeds * weights[..., None]
    lex_embeds = lex_embeds.sum(axis=3).reshape(B, S, -1)
    return jnp.concatenate([token_embeds, lex_embeds], axis=-1)


if __name__ == "__main__":
    key = jax.random.PRNGKey(0)
    k1, k2, k3, k4, k5 = jax.random.split(key, 5)

    # Small, module-consistent shapes.
    B, S = 2, 8
    n_tokens, token_dim = 100, 32
    n_lexicons, lexicon_dim = 50, 16
    n_sets, max_n = 4, 5

    # Deterministic "pretrained" embedding tables (nn.Embedding default: N(0,1)).
    token_table = jax.random.normal(k1, (n_tokens, token_dim), dtype=jnp.float32)
    lexicon_table = jax.random.normal(k2, (n_lexicons, lexicon_dim), dtype=jnp.float32)

    inputs = jax.random.randint(k3, (B, S), 0, n_tokens, dtype=jnp.int32)
    lexicons = jax.random.randint(k4, (B, S, n_sets, max_n), 0, n_lexicons,
                                  dtype=jnp.int32)
    weights = jax.random.uniform(k5, (B, S, n_sets, max_n), dtype=jnp.float32)

    out = softword_embedding(inputs, lexicons, weights, token_table, lexicon_table)
    out = jax.block_until_ready(out)

    ref = _reference(inputs, lexicons, weights, token_table, lexicon_table)
    assert out.shape == (B, S, token_dim + n_sets * lexicon_dim)
    assert jnp.allclose(out, ref, atol=1e-4, rtol=1e-4)

    print("KERNEL_OK")
</pallas_src>

<mosaic_0001>
module attributes {stable_mosaic.version = 11 : i64} {
  func.func @_softword_kernel(%arg0: i32, %arg1: memref<16x1xi32, #tpu.memory_space<vmem>>, %arg2: memref<16x20xi32, #tpu.memory_space<vmem>>, %arg3: memref<16x20xf32, #tpu.memory_space<vmem>>, %arg4: memref<128x32xf32, #tpu.memory_space<vmem>>, %arg5: memref<128x16xf32, #tpu.memory_space<vmem>>, %arg6: memref<16x128xf32, #tpu.memory_space<vmem>>) attributes {dimension_semantics = [#tpu.dimension_semantics<parallel>], iteration_bounds = array<i64: 1>, scalar_prefetch = 0 : i64, scratch_operands = 0 : i64, tpu.core_type = #tpu.core_type<tc>, window_params = [{transform_indices = @transform_0, window_bounds = array<i64: 16, 1>}, {transform_indices = @transform_1, window_bounds = array<i64: 16, 20>}, {transform_indices = @transform_2, window_bounds = array<i64: 16, 20>}, {pipeline_mode = #tpu.pipeline_mode<synchronous>, transform_indices = @transform_3, window_bounds = array<i64: 128, 32>}, {pipeline_mode = #tpu.pipeline_mode<synchronous>, transform_indices = @transform_4, window_bounds = array<i64: 128, 16>}, {transform_indices = @transform_5, window_bounds = array<i64: 16, 128>}]} {
    %c0 = arith.constant 0 : index
    %c0_0 = arith.constant 0 : index
    %0 = vector.load %arg1[%c0, %c0_0] : memref<16x1xi32, #tpu.memory_space<vmem>>, vector<16x1xi32>
    %1 = tpu.iota {dimensions = array<i32: 1>} : vector<16x128xi32>
    %2 = vector.broadcast %0 : vector<16x1xi32> to vector<16x128xi32>
    %3 = arith.cmpi eq, %2, %1 : vector<16x128xi32>
    %4 = arith.extui %3 : vector<16x128xi1> to vector<16x128xi32>
    %5 = arith.sitofp %4 : vector<16x128xi32> to vector<16x128xf32>
    %c0_1 = arith.constant 0 : index
    %c0_2 = arith.constant 0 : index
    %6 = vector.load %arg4[%c0_1, %c0_2] : memref<128x32xf32, #tpu.memory_space<vmem>>, vector<128x32xf32>
    %cst = arith.constant dense<0.000000e+00> : vector<16x32xf32>
    %7 = tpu.matmul %5, %6, %cst {dimension_numbers = #tpu.dot_dimension_numbers<[1], [0], [0], [1], [0, 0, 1, 1], [], []>} : vector<16x128xf32>, vector<128x32xf32>, vector<16x32xf32> -> vector<16x32xf32>
    %c0_3 = arith.constant 0 : index
    %c0_4 = arith.constant 0 : index
    %8 = vector.load %arg6[%c0_3, %c0_4] : memref<16x128xf32, #tpu.memory_space<vmem>>, vector<16x32xf32>
    tpu.vector_store %arg6[%c0_3, %c0_4], %7 {strides = array<i32>} : memref<16x128xf32, #tpu.memory_space<vmem>>, vector<16x32xf32>,
    %c0_5 = arith.constant 0 : index
    %c0_6 = arith.constant 0 : index
    %9 = vector.load %arg2[%c0_5, %c0_6] : memref<16x20xi32, #tpu.memory_space<vmem>>, vector<16x20xi32>
    %c0_7 = arith.constant 0 : index
    %c0_8 = arith.constant 0 : index
    %10 = vector.load %arg3[%c0_7, %c0_8] : memref<16x20xf32, #tpu.memory_space<vmem>>, vector<16x20xf32>
    %c0_9 = arith.constant 0 : index
    %c0_10 = arith.constant 0 : index
    %11 = vector.load %arg5[%c0_9, %c0_10] : memref<128x16xf32, #tpu.memory_space<vmem>>, vector<128x16xf32>
    %12 = tpu.iota {dimensions = array<i32: 1>} : vector<16x128xi32>
    %cst_11 = arith.constant 0.000000e+00 : f32
    %13 = vector.broadcast %cst_11 : f32 to vector<16x128xf32>
    %14 = vector.extract_strided_slice %9 {offsets = [0, 0], sizes = [16, 1], strides = [1, 1]} : vector<16x20xi32> to vector<16x1xi32>
    %15 = vector.extract_strided_slice %10 {offsets = [0, 0], sizes = [16, 1], strides = [1, 1]} : vector<16x20xf32> to vector<16x1xf32>
    %16 = vector.broadcast %14 : vector<16x1xi32> to vector<16x128xi32>
    %17 = arith.cmpi eq, %16, %12 : vector<16x128xi32>
    %cst_12 = arith.constant 0.000000e+00 : f32
    %18 = vector.shape_cast %15 : vector<16x1xf32> to vector<16x1xf32>
    %19 = vector.broadcast %18 : vector<16x1xf32> to vector<16x128xf32>
    %20 = vector.broadcast %cst_12 : f32 to vector<16x128xf32>
    %21 = arith.select %17, %19, %20 : vector<16x128xi1>, vector<16x128xf32>
    %22 = arith.addf %13, %21 : vector<16x128xf32>
    %23 = vector.extract_strided_slice %9 {offsets = [0, 1], sizes = [16, 1], strides = [1, 1]} : vector<16x20xi32> to vector<16x1xi32>
    %24 = vector.extract_strided_slice %10 {offsets = [0, 1], sizes = [16, 1], strides = [1, 1]} : vector<16x20xf32> to vector<16x1xf32>
    %25 = vector.broadcast %23 : vector<16x1xi32> to vector<16x128xi32>
    %26 = arith.cmpi eq, %25, %12 : vector<16x128xi32>
    %cst_13 = arith.constant 0.000000e+00 : f32
    %27 = vector.shape_cast %24 : vector<16x1xf32> to vector<16x1xf32>
    %28 = vector.broadcast %27 : vector<16x1xf32> to vector<16x128xf32>
    %29 = vector.broadcast %cst_13 : f32 to vector<16x128xf32>
    %30 = arith.select %26, %28, %29 : vector<16x128xi1>, vector<16x128xf32>
    %31 = arith.addf %22, %30 : vector<16x128xf32>
    %32 = vector.extract_strided_slice %9 {offsets = [0, 2], sizes = [16, 1], strides = [1, 1]} : vector<16x20xi32> to vector<16x1xi32>
    %33 = vector.extract_strided_slice %10 {offsets = [0, 2], sizes = [16, 1], strides = [1, 1]} : vector<16x20xf32> to vector<16x1xf32>
    %34 = vector.broadcast %32 : vector<16x1xi32> to vector<16x128xi32>
    %35 = arith.cmpi eq, %34, %12 : vector<16x128xi32>
    %cst_14 = arith.constant 0.000000e+00 : f32
    %36 = vector.shape_cast %33 : vector<16x1xf32> to vector<16x1xf32>
    %37 = vector.broadcast %36 : vector<16x1xf32> to vector<16x128xf32>
    %38 = vector.broadcast %cst_14 : f32 to vector<16x128xf32>
    %39 = arith.select %35, %37, %38 : vector<16x128xi1>, vector<16x128xf32>
    %40 = arith.addf %31, %39 : vector<16x128xf32>
    %41 = vector.extract_strided_slice %9 {offsets = [0, 3], sizes = [16, 1], strides = [1, 1]} : vector<16x20xi32> to vector<16x1xi32>
    %42 = vector.extract_strided_slice %10 {offsets = [0, 3], sizes = [16, 1], strides = [1, 1]} : vector<16x20xf32> to vector<16x1xf32>
    %43 = vector.broadcast %41 : vector<16x1xi32> to vector<16x128xi32>
    %44 = arith.cmpi eq, %43, %12 : vector<16x128xi32>
    %cst_15 = arith.constant 0.000000e+00 : f32
    %45 = vector.shape_cast %42 : vector<16x1xf32> to vector<16x1xf32>
    %46 = vector.broadcast %45 : vector<16x1xf32> to vector<16x128xf32>
    %47 = vector.broadcast %cst_15 : f32 to vector<16x128xf32>
    %48 = arith.select %44, %46, %47 : vector<16x128xi1>, vector<16x128xf32>
    %49 = arith.addf %40, %48 : vector<16x128xf32>
    %50 = vector.extract_strided_slice %9 {offsets = [0, 4], sizes = [16, 1], strides = [1, 1]} : vector<16x20xi32> to vector<16x1xi32>
    %51 = vector.extract_strided_slice %10 {offsets = [0, 4], sizes = [16, 1], strides = [1, 1]} : vector<16x20xf32> to vector<16x1xf32>
    %52 = vector.broadcast %50 : vector<16x1xi32> to vector<16x128xi32>
    %53 = arith.cmpi eq, %52, %12 : vector<16x128xi32>
    %cst_16 = arith.constant 0.000000e+00 : f32
    %54 = vector.shape_cast %51 : vector<16x1xf32> to vector<16x1xf32>
    %55 = vector.broadcast %54 : vector<16x1xf32> to vector<16x128xf32>
    %56 = vector.broadcast %cst_16 : f32 to vector<16x128xf32>
    %57 = arith.select %53, %55, %56 : vector<16x128xi1>, vector<16x128xf32>
    %58 = arith.addf %49, %57 : vector<16x128xf32>
    %cst_17 = arith.constant dense<0.000000e+00> : vector<16x16xf32>
    %59 = tpu.matmul %58, %11, %cst_17 {dimension_numbers = #tpu.dot_dimension_numbers<[1], [0], [0], [1], [0, 0, 1, 1], [], []>} : vector<16x128xf32>, vector<128x16xf32>, vector<16x16xf32> -> vector<16x16xf32>
    %c0_18 = arith.constant 0 : index
    %c32 = arith.constant 32 : index
    %60 = vector.load %arg6[%c0_18, %c32] : memref<16x128xf32, #tpu.memory_space<vmem>>, vector<16x16xf32>
    tpu.vector_store %arg6[%c0_18, %c32], %59 {strides = array<i32>} : memref<16x128xf32, #tpu.memory_space<vmem>>, vector<16x16xf32>,
    %cst_19 = arith.constant 0.000000e+00 : f32
    %61 = vector.broadcast %cst_19 : f32 to vector<16x128xf32>
    %62 = vector.extract_strided_slice %9 {offsets = [0, 5], sizes = [16, 1], strides = [1, 1]} : vector<16x20xi32> to vector<16x1xi32>
    %63 = vector.extract_strided_slice %10 {offsets = [0, 5], sizes = [16, 1], strides = [1, 1]} : vector<16x20xf32> to vector<16x1xf32>
    %64 = vector.broadcast %62 : vector<16x1xi32> to vector<16x128xi32>
    %65 = arith.cmpi eq, %64, %12 : vector<16x128xi32>
    %cst_20 = arith.constant 0.000000e+00 : f32
    %66 = vector.shape_cast %63 : vector<16x1xf32> to vector<16x1xf32>
    %67 = vector.broadcast %66 : vector<16x1xf32> to vector<16x128xf32>
    %68 = vector.broadcast %cst_20 : f32 to vector<16x128xf32>
    %69 = arith.select %65, %67, %68 : vector<16x128xi1>, vector<16x128xf32>
    %70 = arith.addf %61, %69 : vector<16x128xf32>
    %71 = vector.extract_strided_slice %9 {offsets = [0, 6], sizes = [16, 1], strides = [1, 1]} : vector<16x20xi32> to vector<16x1xi32>
    %72 = vector.extract_strided_slice %10 {offsets = [0, 6], sizes = [16, 1], strides = [1, 1]} : vector<16x20xf32> to vector<16x1xf32>
    %73 = vector.broadcast %71 : vector<16x1xi32> to vector<16x128xi32>
    %74 = arith.cmpi eq, %73, %12 : vector<16x128xi32>
    %cst_21 = arith.constant 0.000000e+00 : f32
    %75 = vector.shape_cast %72 : vector<16x1xf32> to vector<16x1xf32>
    %76 = vector.broadcast %75 : vector<16x1xf32> to vector<16x128xf32>
    %77 = vector.broadcast %cst_21 : f32 to vector<16x128xf32>
    %78 = arith.select %74, %76, %77 : vector<16x128xi1>, vector<16x128xf32>
    %79 = arith.addf %70, %78 : vector<16x128xf32>
    %80 = vector.extract_strided_slice %9 {offsets = [0, 7], sizes = [16, 1], strides = [1, 1]} : vector<16x20xi32> to vector<16x1xi32>
    %81 = vector.extract_strided_slice %10 {offsets = [0, 7], sizes = [16, 1], strides = [1, 1]} : vector<16x20xf32> to vector<16x1xf32>
    %82 = vector.broadcast %80 : vector<16x1xi32> to vector<16x128xi32>
    %83 = arith.cmpi eq, %82, %12 : vector<16x128xi32>
    %cst_22 = arith.constant 0.000000e+00 : f32
    %84 = vector.shape_cast %81 : vector<16x1xf32> to vector<16x1xf32>
    %85 = vector.broadcast %84 : vector<16x1xf32> to vector<16x128xf32>
    %86 = vector.broadcast %cst_22 : f32 to vector<16x128xf32>
    %87 = arith.select %83, %85, %86 : vector<16x128xi1>, vector<16x128xf32>
    %88 = arith.addf %79, %87 : vector<16x128xf32>
    %89 = vector.extract_strided_slice %9 {offsets = [0, 8], sizes = [16, 1], strides = [1, 1]} : vector<16x20xi32> to vector<16x1xi32>
    %90 = vector.extract_strided_slice %10 {offsets = [0, 8], sizes = [16, 1], strides = [1, 1]} : vector<16x20xf32> to vector<16x1xf32>
    %91 = vector.broadcast %89 : vector<16x1xi32> to vector<16x128xi32>
    %92 = arith.cmpi eq, %91, %12 : vector<16x128xi32>
    %cst_23 = arith.constant 0.000000e+00 : f32
    %93 = vector.shape_cast %90 : vector<16x1xf32> to vector<16x1xf32>
    %94 = vector.broadcast %93 : vector<16x1xf32> to vector<16x128xf32>
    %95 = vector.broadcast %cst_23 : f32 to vector<16x128xf32>
    %96 = arith.select %92, %94, %95 : vector<16x128xi1>, vector<16x128xf32>
    %97 = arith.addf %88, %96 : vector<16x128xf32>
    %98 = vector.extract_strided_slice %9 {offsets = [0, 9], sizes = [16, 1], strides = [1, 1]} : vector<16x20xi32> to vector<16x1xi32>
    %99 = vector.extract_strided_slice %10 {offsets = [0, 9], sizes = [16, 1], strides = [1, 1]} : vector<16x20xf32> to vector<16x1xf32>
    %100 = vector.broadcast %98 : vector<16x1xi32> to vector<16x128xi32>
    %101 = arith.cmpi eq, %100, %12 : vector<16x128xi32>
    %cst_24 = arith.constant 0.000000e+00 : f32
    %102 = vector.shape_cast %99 : vector<16x1xf32> to vector<16x1xf32>
    %103 = vector.broadcast %102 : vector<16x1xf32> to vector<16x128xf32>
    %104 = vector.broadcast %cst_24 : f32 to vector<16x128xf32>
    %105 = arith.select %101, %103, %104 : vector<16x128xi1>, vector<16x128xf32>
    %106 = arith.addf %97, %105 : vector<16x128xf32>
    %cst_25 = arith.constant dense<0.000000e+00> : vector<16x16xf32>
    %107 = tpu.matmul %106, %11, %cst_25 {dimension_numbers = #tpu.dot_dimension_numbers<[1], [0], [0], [1], [0, 0, 1, 1], [], []>} : vector<16x128xf32>, vector<128x16xf32>, vector<16x16xf32> -> vector<16x16xf32>
    %c0_26 = arith.constant 0 : index
    %c48 = arith.constant 48 : index
    %108 = vector.load %arg6[%c0_26, %c48] : memref<16x128xf32, #tpu.memory_space<vmem>>, vector<16x16xf32>
    tpu.vector_store %arg6[%c0_26, %c48], %107 {strides = array<i32>} : memref<16x128xf32, #tpu.memory_space<vmem>>, vector<16x16xf32>,
    %cst_27 = arith.constant 0.000000e+00 : f32
    %109 = vector.broadcast %cst_27 : f32 to vector<16x128xf32>
    %110 = vector.extract_strided_slice %9 {offsets = [0, 10], sizes = [16, 1], strides = [1, 1]} : vector<16x20xi32> to vector<16x1xi32>
    %111 = vector.extract_strided_slice %10 {offsets = [0, 10], sizes = [16, 1], strides = [1, 1]} : vector<16x20xf32> to vector<16x1xf32>
    %112 = vector.broadcast %110 : vector<16x1xi32> to vector<16x128xi32>
    %113 = arith.cmpi eq, %112, %12 : vector<16x128xi32>
    %cst_28 = arith.constant 0.000000e+00 : f32
    %114 = vector.shape_cast %111 : vector<16x1xf32> to vector<16x1xf32>
    %115 = vector.broadcast %114 : vector<16x1xf32> to vector<16x128xf32>
    %116 = vector.broadcast %cst_28 : f32 to vector<16x128xf32>
    %117 = arith.select %113, %115, %116 : vector<16x128xi1>, vector<16x128xf32>
    %118 = arith.addf %109, %117 : vector<16x128xf32>
    %119 = vector.extract_strided_slice %9 {offsets = [0, 11], sizes = [16, 1], strides = [1, 1]} : vector<16x20xi32> to vector<16x1xi32>
    %120 = vector.extract_strided_slice %10 {offsets = [0, 11], sizes = [16, 1], strides = [1, 1]} : vector<16x20xf32> to vector<16x1xf32>
    %121 = vector.broadcast %119 : vector<16x1xi32> to vector<16x128xi32>
    %122 = arith.cmpi eq, %121, %12 : vector<16x128xi32>
    %cst_29 = arith.constant 0.000000e+00 : f32
    %123 = vector.shape_cast %120 : vector<16x1xf32> to vector<16x1xf32>
    %124 = vector.broadcast %123 : vector<16x1xf32> to vector<16x128xf32>
    %125 = vector.broadcast %cst_29 : f32 to vector<16x128xf32>
    %126 = arith.select %122, %124, %125 : vector<16x128xi1>, vector<16x128xf32>
    %127 = arith.addf %118, %126 : vector<16x128xf32>
    %128 = vector.extract_strided_slice %9 {offsets = [0, 12], sizes = [16, 1], strides = [1, 1]} : vector<16x20xi32> to vector<16x1xi32>
    %129 = vector.extract_strided_slice %10 {offsets = [0, 12], sizes = [16, 1], strides = [1, 1]} : vector<16x20xf32> to vector<16x1xf32>
    %130 = vector.broadcast %128 : vector<16x1xi32> to vector<16x128xi32>
    %131 = arith.cmpi eq, %130, %12 : vector<16x128xi32>
    %cst_30 = arith.constant 0.000000e+00 : f32
    %132 = vector.shape_cast %129 : vector<16x1xf32> to vector<16x1xf32>
    %133 = vector.broadcast %132 : vector<16x1xf32> to vector<16x128xf32>
    %134 = vector.broadcast %cst_30 : f32 to vector<16x128xf32>
    %135 = arith.select %131, %133, %134 : vector<16x128xi1>, vector<16x128xf32>
    %136 = arith.addf %127, %135 : vector<16x128xf32>
    %137 = vector.extract_strided_slice %9 {offsets = [0, 13], sizes = [16, 1], strides = [1, 1]} : vector<16x20xi32> to vector<16x1xi32>
    %138 = vector.extract_strided_slice %10 {offsets = [0, 13], sizes = [16, 1], strides = [1, 1]} : vector<16x20xf32> to vector<16x1xf32>
    %139 = vector.broadcast %137 : vector<16x1xi32> to vector<16x128xi32>
    %140 = arith.cmpi eq, %139, %12 : vector<16x128xi32>
    %cst_31 = arith.constant 0.000000e+00 : f32
    %141 = vector.shape_cast %138 : vector<16x1xf32> to vector<16x1xf32>
    %142 = vector.broadcast %141 : vector<16x1xf32> to vector<16x128xf32>
    %143 = vector.broadcast %cst_31 : f32 to vector<16x128xf32>
    %144 = arith.select %140, %142, %143 : vector<16x128xi1>, vector<16x128xf32>
    %145 = arith.addf %136, %144 : vector<16x128xf32>
    %146 = vector.extract_strided_slice %9 {offsets = [0, 14], sizes = [16, 1], strides = [1, 1]} : vector<16x20xi32> to vector<16x1xi32>
    %147 = vector.extract_strided_slice %10 {offsets = [0, 14], sizes = [16, 1], strides = [1, 1]} : vector<16x20xf32> to vector<16x1xf32>
    %148 = vector.broadcast %146 : vector<16x1xi32> to vector<16x128xi32>
    %149 = arith.cmpi eq, %148, %12 : vector<16x128xi32>
    %cst_32 = arith.constant 0.000000e+00 : f32
    %150 = vector.shape_cast %147 : vector<16x1xf32> to vector<16x1xf32>
    %151 = vector.broadcast %150 : vector<16x1xf32> to vector<16x128xf32>
    %152 = vector.broadcast %cst_32 : f32 to vector<16x128xf32>
    %153 = arith.select %149, %151, %152 : vector<16x128xi1>, vector<16x128xf32>
    %154 = arith.addf %145, %153 : vector<16x128xf32>
    %cst_33 = arith.constant dense<0.000000e+00> : vector<16x16xf32>
    %155 = tpu.matmul %154, %11, %cst_33 {dimension_numbers = #tpu.dot_dimension_numbers<[1], [0], [0], [1], [0, 0, 1, 1], [], []>} : vector<16x128xf32>, vector<128x16xf32>, vector<16x16xf32> -> vector<16x16xf32>
    %c0_34 = arith.constant 0 : index
    %c64 = arith.constant 64 : index
    %156 = vector.load %arg6[%c0_34, %c64] : memref<16x128xf32, #tpu.memory_space<vmem>>, vector<16x16xf32>
    tpu.vector_store %arg6[%c0_34, %c64], %155 {strides = array<i32>} : memref<16x128xf32, #tpu.memory_space<vmem>>, vector<16x16xf32>,
    %cst_35 = arith.constant 0.000000e+00 : f32
    %157 = vector.broadcast %cst_35 : f32 to vector<16x128xf32>
    %158 = vector.extract_strided_slice %9 {offsets = [0, 15], sizes = [16, 1], strides = [1, 1]} : vector<16x20xi32> to vector<16x1xi32>
    %159 = vector.extract_strided_slice %10 {offsets = [0, 15], sizes = [16, 1], strides = [1, 1]} : vector<16x20xf32> to vector<16x1xf32>
    %160 = vector.broadcast %158 : vector<16x1xi32> to vector<16x128xi32>
    %161 = arith.cmpi eq, %160, %12 : vector<16x128xi32>
    %cst_36 = arith.constant 0.000000e+00 : f32
    %162 = vector.shape_cast %159 : vector<16x1xf32> to vector<16x1xf32>
    %163 = vector.broadcast %162 : vector<16x1xf32> to vector<16x128xf32>
    %164 = vector.broadcast %cst_36 : f32 to vector<16x128xf32>
    %165 = arith.select %161, %163, %164 : vector<16x128xi1>, vector<16x128xf32>
    %166 = arith.addf %157, %165 : vector<16x128xf32>
    %167 = vector.extract_strided_slice %9 {offsets = [0, 16], sizes = [16, 1], strides = [1, 1]} : vector<16x20xi32> to vector<16x1xi32>
    %168 = vector.extract_strided_slice %10 {offsets = [0, 16], sizes = [16, 1], strides = [1, 1]} : vector<16x20xf32> to vector<16x1xf32>
    %169 = vector.broadcast %167 : vector<16x1xi32> to vector<16x128xi32>
    %170 = arith.cmpi eq, %169, %12 : vector<16x128xi32>
    %cst_37 = arith.constant 0.000000e+00 : f32
    %171 = vector.shape_cast %168 : vector<16x1xf32> to vector<16x1xf32>
    %172 = vector.broadcast %171 : vector<16x1xf32> to vector<16x128xf32>
    %173 = vector.broadcast %cst_37 : f32 to vector<16x128xf32>
    %174 = arith.select %170, %172, %173 : vector<16x128xi1>, vector<16x128xf32>
    %175 = arith.addf %166, %174 : vector<16x128xf32>
    %176 = vector.extract_strided_slice %9 {offsets = [0, 17], sizes = [16, 1], strides = [1, 1]} : vector<16x20xi32> to vector<16x1xi32>
    %177 = vector.extract_strided_slice %10 {offsets = [0, 17], sizes = [16, 1], strides = [1, 1]} : vector<16x20xf32> to vector<16x1xf32>
    %178 = vector.broadcast %176 : vector<16x1xi32> to vector<16x128xi32>
    %179 = arith.cmpi eq, %178, %12 : vector<16x128xi32>
    %cst_38 = arith.constant 0.000000e+00 : f32
    %180 = vector.shape_cast %177 : vector<16x1xf32> to vector<16x1xf32>
    %181 = vector.broadcast %180 : vector<16x1xf32> to vector<16x128xf32>
    %182 = vector.broadcast %cst_38 : f32 to vector<16x128xf32>
    %183 = arith.select %179, %181, %182 : vector<16x128xi1>, vector<16x128xf32>
    %184 = arith.addf %175, %183 : vector<16x128xf32>
    %185 = vector.extract_strided_slice %9 {offsets = [0, 18], sizes = [16, 1], strides = [1, 1]} : vector<16x20xi32> to vector<16x1xi32>
    %186 = vector.extract_strided_slice %10 {offsets = [0, 18], sizes = [16, 1], strides = [1, 1]} : vector<16x20xf32> to vector<16x1xf32>
    %187 = vector.broadcast %185 : vector<16x1xi32> to vector<16x128xi32>
    %188 = arith.cmpi eq, %187, %12 : vector<16x128xi32>
    %cst_39 = arith.constant 0.000000e+00 : f32
    %189 = vector.shape_cast %186 : vector<16x1xf32> to vector<16x1xf32>
    %190 = vector.broadcast %189 : vector<16x1xf32> to vector<16x128xf32>
    %191 = vector.broadcast %cst_39 : f32 to vector<16x128xf32>
    %192 = arith.select %188, %190, %191 : vector<16x128xi1>, vector<16x128xf32>
    %193 = arith.addf %184, %192 : vector<16x128xf32>
    %194 = vector.extract_strided_slice %9 {offsets = [0, 19], sizes = [16, 1], strides = [1, 1]} : vector<16x20xi32> to vector<16x1xi32>
    %195 = vector.extract_strided_slice %10 {offsets = [0, 19], sizes = [16, 1], strides = [1, 1]} : vector<16x20xf32> to vector<16x1xf32>
    %196 = vector.broadcast %194 : vector<16x1xi32> to vector<16x128xi32>
    %197 = arith.cmpi eq, %196, %12 : vector<16x128xi32>
    %cst_40 = arith.constant 0.000000e+00 : f32
    %198 = vector.shape_cast %195 : vector<16x1xf32> to vector<16x1xf32>
    %199 = vector.broadcast %198 : vector<16x1xf32> to vector<16x128xf32>
    %200 = vector.broadcast %cst_40 : f32 to vector<16x128xf32>
    %201 = arith.select %197, %199, %200 : vector<16x128xi1>, vector<16x128xf32>
    %202 = arith.addf %193, %201 : vector<16x128xf32>
    %cst_41 = arith.constant dense<0.000000e+00> : vector<16x16xf32>
    %203 = tpu.matmul %202, %11, %cst_41 {dimension_numbers = #tpu.dot_dimension_numbers<[1], [0], [0], [1], [0, 0, 1, 1], [], []>} : vector<16x128xf32>, vector<128x16xf32>, vector<16x16xf32> -> vector<16x16xf32>
    %c0_42 = arith.constant 0 : index
    %c80 = arith.constant 80 : index
    %204 = vector.load %arg6[%c0_42, %c80] : memref<16x128xf32, #tpu.memory_space<vmem>>, vector<16x16xf32>
    tpu.vector_store %arg6[%c0_42, %c80], %203 {strides = array<i32>} : memref<16x128xf32, #tpu.memory_space<vmem>>, vector<16x16xf32>,
    %cst_43 = arith.constant 0.000000e+00 : f32
    %205 = vector.broadcast %cst_43 : f32 to vector<16x32xf32>
    %c0_44 = arith.constant 0 : index
    %c96 = arith.constant 96 : index
    %206 = vector.load %arg6[%c0_44, %c96] : memref<16x128xf32, #tpu.memory_space<vmem>>, vector<16x32xf32>
    tpu.vector_store %arg6[%c0_44, %c96], %205 {strides = array<i32>} : memref<16x128xf32, #tpu.memory_space<vmem>>, vector<16x32xf32>,
    return
  }
  func.func @transform_0(%arg0: i32) -> (i32, i32) {
    %c0_i32 = arith.constant 0 : i32
    %c0_i32_0 = arith.constant 0 : i32
    return %arg0, %c0_i32 : i32, i32
  }
  func.func @transform_1(%arg0: i32) -> (i32, i32) {
    %c0_i32 = arith.constant 0 : i32
    %c0_i32_0 = arith.constant 0 : i32
    return %arg0, %c0_i32 : i32, i32
  }
  func.func @transform_2(%arg0: i32) -> (i32, i32) {
    %c0_i32 = arith.constant 0 : i32
    %c0_i32_0 = arith.constant 0 : i32
    return %arg0, %c0_i32 : i32, i32
  }
  func.func @transform_3(%arg0: i32) -> (i32, i32) {
    %c0_i32 = arith.constant 0 : i32
    %c0_i32_0 = arith.constant 0 : i32
    %c0_i32_1 = arith.constant 0 : i32
    return %c0_i32, %c0_i32_0 : i32, i32
  }
  func.func @transform_4(%arg0: i32) -> (i32, i32) {
    %c0_i32 = arith.constant 0 : i32
    %c0_i32_0 = arith.constant 0 : i32
    %c0_i32_1 = arith.constant 0 : i32
    return %c0_i32, %c0_i32_0 : i32, i32
  }
  func.func @transform_5(%arg0: i32) -> (i32, i32) {
    %c0_i32 = arith.constant 0 : i32
    %c0_i32_0 = arith.constant 0 : i32
    return %arg0, %c0_i32 : i32, i32
  }
}

</mosaic_0001>

<llo_original>
// kernel: tpu_custom_call.1
$region0: #{tpu_custom_call.1}
  #allocation0 [shape = 'u32[]', space=smem, size = 0x4, offset = 0x4, fixed_abs, tag = 'smem constant byte address 0x4 - core index']
  #allocation1 [shape = 'u32[144,128]{1,0:T(1,128)}', space=vmem, size = 0x12000, scoped, tag = 'internal scratch']
  %s0 = inlined_call_operand.vmem [shape: s32[16,1], index: 0, kind: input, shape index: {}]
  %s1 = inlined_call_operand.vmem [shape: s32[16,20], index: 1, kind: input, shape index: {}]
  %s2 = inlined_call_operand.vmem [shape: f32[16,20], index: 2, kind: input, shape index: {}]
  %s3 = inlined_call_operand.vmem [shape: f32[128,32], index: 3, kind: input, shape index: {}]
  %s4 = inlined_call_operand.vmem [shape: f32[128,16], index: 4, kind: input, shape index: {}]
  %s5 = inlined_call_operand.hbm [shape: f32[16,128], index: 5, kind: output, shape index: {}]
  %s6 = sld [smem:[#allocation0]]
  $region30: #{tpu_custom_call.1} parent=0
    _
  %s8 = ssub.s32 1, %s6
  %s9 = scalar_select 0, %s8, %s6
  $region1: #{tpu_custom_call.1} parent=0
    #allocation2 [shape = 'u8[8192]{0}', space=vmem, size = 0x2000, scoped, tag = 'output window, operand 0, single buffered']
    #allocation3 [shape = 's32[1]{0}', space=sflag, size = 0x4, scoped, tag = 'scoped memory for tpu_custom_call.1']
    %10 = vsyncpa [#allocation3], 0
    // Predicated region
    $region2: #{tpu_custom_call.1} parent=1 // pred_check
      _
    $region3: #{tpu_custom_call.1} parent=1 // pred_check_branch
      %12 = sbr.rel (0) target = $region5
    $region4: #{tpu_custom_call.1} parent=1 // pred_region
      _
    $region5: #{tpu_custom_call.1} parent=1 // pred_fallthru
      _
    // Predicated region
    $region6: #{tpu_custom_call.1} parent=1 // pred_check
      _
    $region7: #{tpu_custom_call.1} parent=1 // pred_check_branch
      %14 = sbr.rel (0) target = $region9
    $region8: #{tpu_custom_call.1} parent=1 // pred_region
      _
    $region9: #{tpu_custom_call.1} parent=1 // pred_fallthru
      _
    // Predicated region
    $region10: #{tpu_custom_call.1} parent=1 // pred_check
      _
    $region11: #{tpu_custom_call.1} parent=1 // pred_check_branch
      %16 = sbr.rel (0) target = $region13
    $region12: #{tpu_custom_call.1} parent=1 // pred_region
      _
    $region13: #{tpu_custom_call.1} parent=1 // pred_fallthru
      _
    // Predicated region
    $region14: #{tpu_custom_call.1} parent=1 // pred_check
      _
    $region15: #{tpu_custom_call.1} parent=1 // pred_check_branch
      %18 = sbr.rel (0) target = $region17
    $region16: #{tpu_custom_call.1} parent=1 // pred_region
      _
    $region17: #{tpu_custom_call.1} parent=1 // pred_fallthru
      _
    // Predicated region
    $region18: #{tpu_custom_call.1} parent=1 // pred_check
      _
    $region19: #{tpu_custom_call.1} parent=1 // pred_check_branch
      %20 = sbr.rel (0) target = $region21
    $region20: #{tpu_custom_call.1} parent=1 // pred_region
      _
    $region21: #{tpu_custom_call.1} parent=1 // pred_fallthru
      _
    %v21 = vld [vmem:[%s0] sm:$0xff]
    %v22 = vld [vmem:[%s0 + $0x8] sm:$0xff]
    %v23 = vlaneseq
    %v24 = vand.u32 %v23, 127
    %25 = vset.pattern.permute.xlu0 0
    %26 = vperm.xlu0 %25, %v21
    %v27 = vpop.permute.xlu0 %26
    %28 = vset.pattern.permute.xlu0 0
    %29 = vperm.xlu0 %28, %v22
    %v30 = vpop.permute.xlu0 %29
    %vm31 = vcmp.eq.s32.totalorder %v27, %v24
    %vm32 = vcmp.eq.s32.totalorder %v30, %v24
    %v33 = vsel %vm31, 1, 0
    %v34 = vsel %vm32, 1, 0
    %v35 = vcvt.s32.f32 %v33
    %v36 = vcvt.s32.f32 %v34
    %v37 = vld [vmem:[%s3] sm:$0xff]
    %v38 = vld [vmem:[%s3 + $0x8] sm:$0xff]
    %v39 = vld [vmem:[%s3 + $0x10] sm:$0xff]
    %v40 = vld [vmem:[%s3 + $0x18] sm:$0xff]
    %v41 = vld [vmem:[%s3 + $0x20] sm:$0xff]
    %v42 = vld [vmem:[%s3 + $0x28] sm:$0xff]
    %v43 = vld [vmem:[%s3 + $0x30] sm:$0xff]
    %v44 = vld [vmem:[%s3 + $0x38] sm:$0xff]
    %v45 = vld [vmem:[%s3 + $0x40] sm:$0xff]
    %v46 = vld [vmem:[%s3 + $0x48] sm:$0xff]
    %v47 = vld [vmem:[%s3 + $0x50] sm:$0xff]
    %v48 = vld [vmem:[%s3 + $0x58] sm:$0xff]
    %v49 = vld [vmem:[%s3 + $0x60] sm:$0xff]
    %v50 = vld [vmem:[%s3 + $0x68] sm:$0xff]
    %v51 = vld [vmem:[%s3 + $0x70] sm:$0xff]
    %v52 = vld [vmem:[%s3 + $0x78] sm:$0xff]
    %53 = vmatprep.subr.mxu0 0.0
    %54 = vmatpush1.msra.mxu0 %v52
    %55 = vmatprep.subr.mxu0 0.0
    %56 = vmatpush1.msra.mxu0 %v51
    %57 = vmatprep.subr.mxu0 0.0
    %58 = vmatpush1.msra.mxu0 %v50
    %59 = vmatprep.subr.mxu0 0.0
    %60 = vmatpush1.msra.mxu0 %v49
    %61 = vmatprep.subr.mxu0 0.0
    %62 = vmatpush1.msra.mxu0 %v48
    %63 = vmatprep.subr.mxu0 0.0
    %64 = vmatpush1.msra.mxu0 %v47
    %65 = vmatprep.subr.mxu0 0.0
    %66 = vmatpush1.msra.mxu0 %v46
    %67 = vmatprep.subr.mxu0 0.0
    %68 = vmatpush1.msra.mxu0 %v45
    %69 = vmatprep.subr.mxu0 0.0
    %70 = vmatpush1.msra.mxu0 %v44
    %71 = vmatprep.subr.mxu0 0.0
    %72 = vmatpush1.msra.mxu0 %v43
    %73 = vmatprep.subr.mxu0 0.0
    %74 = vmatpush1.msra.mxu0 %v42
    %75 = vmatprep.subr.mxu0 0.0
    %76 = vmatpush1.msra.mxu0 %v41
    %77 = vmatprep.subr.mxu0 0.0
    %78 = vmatpush1.msra.mxu0 %v40
    %79 = vmatprep.subr.mxu0 0.0
    %80 = vmatpush1.msra.mxu0 %v39
    %81 = vmatprep.subr.mxu0 0.0
    %82 = vmatpush1.msra.mxu0 %v38
    %83 = vmatprep.subr.mxu0 0.0
    %84 = vmatpush1.msra.mxu0 %v37
    %85 = vmatprep.subr.mxu0 0.0
    %86 = vmatpush2.msra.mxu0 0.0
    %87 = vmatprep.subr.mxu0 0.0
    %88 = vmatpush2.msra.mxu0 0.0
    %89 = vmatprep.subr.mxu0 0.0
    %90 = vmatpush2.msra.mxu0 0.0
    %91 = vmatprep.subr.mxu0 0.0
    %92 = vmatpush2.msra.mxu0 0.0
    %93 = vmatprep.subr.mxu0 0.0
    %94 = vmatpush2.msra.mxu0 0.0
    %95 = vmatprep.subr.mxu0 0.0
    %96 = vmatpush2.msra.mxu0 0.0
    %97 = vmatprep.subr.mxu0 0.0
    %98 = vmatpush2.msra.mxu0 0.0
    %99 = vmatprep.subr.mxu0 0.0
    %100 = vmatpush2.msra.mxu0 0.0
    %101 = vmatprep.subr.mxu0 0.0
    %102 = vmatpush2.msra.mxu0 0.0
    %103 = vmatprep.subr.mxu0 0.0
    %104 = vmatpush2.msra.mxu0 0.0
    %105 = vmatprep.subr.mxu0 0.0
    %106 = vmatpush2.msra.mxu0 0.0
    %107 = vmatprep.subr.mxu0 0.0
    %108 = vmatpush2.msra.mxu0 0.0
    %109 = vmatprep.subr.mxu0 0.0
    %110 = vmatpush2.msra.mxu0 0.0
    %111 = vmatprep.subr.mxu0 0.0
    %112 = vmatpush2.msra.mxu0 0.0
    %113 = vmatprep.subr.mxu0 0.0
    %114 = vmatpush2.msra.mxu0 0.0
    %115 = vmatprep.subr.mxu0 0.0
    %116 = vmatpush2.msra.mxu0 0.0
    %117 = vmatprep.mubr.f32.mxu0 0.0
    %118 = vmatmul.mubr.f32.gmra.mxu0 %v35
    %v119 = vpop.f32.mrf.mxu0
    %v120 = vadd.f32 0.0, %v119
    %v121 = vpop.f32.mrf.mxu0
    %122 = vmatprep.mubr.f32.mxu0 0.0
    %123 = vmatmul.mubr.f32.gmra.mxu0 %v36
    %v124 = vpop.f32.mrf.mxu0
    %v125 = vadd.f32 0.0, %v124
    %v126 = vpop.f32.mrf.mxu0
    %127 = vdwg.mxu0
    %vm128 = vcmask 261120
    %129 = vst.msk [vmem:[#allocation2] sm:$0xff] %vm128, %v120
    %130 = vst.msk [vmem:[#allocation2 + $0x8] sm:$0xff] %vm128, %v125
    %v131 = vld [vmem:[%s1] sm:$0xff]
    %v132 = vld [vmem:[%s1 + $0x8] sm:$0xff]
    %v133 = vld [vmem:[%s2] sm:$0xff]
    %v134 = vld [vmem:[%s2 + $0x8] sm:$0xff]
    %v135 = vld [vmem:[%s4] sm:$0xff]
    %v136 = vld [vmem:[%s4 + $0x8] sm:$0xff]
    %v137 = vld [vmem:[%s4 + $0x10] sm:$0xff]
    %v138 = vld [vmem:[%s4 + $0x18] sm:$0xff]
    %v139 = vld [vmem:[%s4 + $0x20] sm:$0xff]
    %v140 = vld [vmem:[%s4 + $0x28] sm:$0xff]
    %v141 = vld [vmem:[%s4 + $0x30] sm:$0xff]
    %v142 = vld [vmem:[%s4 + $0x38] sm:$0xff]
    %v143 = vld [vmem:[%s4 + $0x40] sm:$0xff]
    %v144 = vld [vmem:[%s4 + $0x48] sm:$0xff]
    %v145 = vld [vmem:[%s4 + $0x50] sm:$0xff]
    %v146 = vld [vmem:[%s4 + $0x58] sm:$0xff]
    %v147 = vld [vmem:[%s4 + $0x60] sm:$0xff]
    %v148 = vld [vmem:[%s4 + $0x68] sm:$0xff]
    %v149 = vld [vmem:[%s4 + $0x70] sm:$0xff]
    %v150 = vld [vmem:[%s4 + $0x78] sm:$0xff]
    %151 = vset.pattern.permute.xlu0 0
    %152 = vperm.xlu0 %151, %v131
    %v153 = vpop.permute.xlu0 %152
    %154 = vset.pattern.permute.xlu0 0
    %155 = vperm.xlu0 %154, %v132
    %v156 = vpop.permute.xlu0 %155
    %vm157 = vcmp.eq.s32.totalorder %v153, %v24
    %vm158 = vcmp.eq.s32.totalorder %v156, %v24
    %160 = vset.pattern.permute.xlu0 0
    %161 = vperm.xlu0 %160, %v133
    %v162 = vpop.permute.xlu0 %161
    %165 = vset.pattern.permute.xlu0 0
    %166 = vperm.xlu0 %165, %v134
    %v167 = vpop.permute.xlu0 %166
    %v169 = vsel %vm157, %v162, 0.0
    %v170 = vsel %vm158, %v167, 0.0
    %v171 = vadd.f32 %v169, 0.0
    %v172 = vadd.f32 %v170, 0.0
    %173 = vset.pattern.permute.xlu0 1
    %174 = vperm.xlu0 %173, %v131
    %v175 = vpop.permute.xlu0 %174
    %176 = vset.pattern.permute.xlu0 1
    %177 = vperm.xlu0 %176, %v132
    %v178 = vpop.permute.xlu0 %177
    %vm179 = vcmp.eq.s32.totalorder %v175, %v24
    %vm180 = vcmp.eq.s32.totalorder %v178, %v24
    %181 = vset.pattern.permute.xlu0 1
    %182 = vperm.xlu0 %181, %v133
    %v183 = vpop.permute.xlu0 %182
    %185 = vset.pattern.permute.xlu0 1
    %186 = vperm.xlu0 %185, %v134
    %v187 = vpop.permute.xlu0 %186
    %v189 = vsel %vm179, %v183, 0.0
    %v190 = vsel %vm180, %v187, 0.0
    %v191 = vadd.f32 %v171, %v189
    %v192 = vadd.f32 %v172, %v190
    %193 = vset.pattern.permute.xlu0 2
    %194 = vperm.xlu0 %193, %v131
    %v195 = vpop.permute.xlu0 %194
    %196 = vset.pattern.permute.xlu0 2
    %197 = vperm.xlu0 %196, %v132
    %v198 = vpop.permute.xlu0 %197
    %vm199 = vcmp.eq.s32.totalorder %v195, %v24
    %vm200 = vcmp.eq.s32.totalorder %v198, %v24
    %201 = vset.pattern.permute.xlu0 2
    %202 = vperm.xlu0 %201, %v133
    %v203 = vpop.permute.xlu0 %202
    %205 = vset.pattern.permute.xlu0 2
    %206 = vperm.xlu0 %205, %v134
    %v207 = vpop.permute.xlu0 %206
    %v209 = vsel %vm199, %v203, 0.0
    %v210 = vsel %vm200, %v207, 0.0
    %v211 = vadd.f32 %v191, %v209
    %v212 = vadd.f32 %v192, %v210
    %213 = vset.pattern.permute.xlu0 3
    %214 = vperm.xlu0 %213, %v131
    %v215 = vpop.permute.xlu0 %214
    %216 = vset.pattern.permute.xlu0 3
    %217 = vperm.xlu0 %216, %v132
    %v218 = vpop.permute.xlu0 %217
    %vm219 = vcmp.eq.s32.totalorder %v215, %v24
    %vm220 = vcmp.eq.s32.totalorder %v218, %v24
    %221 = vset.pattern.permute.xlu0 3
    %222 = vperm.xlu0 %221, %v133
    %v223 = vpop.permute.xlu0 %222
    %225 = vset.pattern.permute.xlu0 3
    %226 = vperm.xlu0 %225, %v134
    %v227 = vpop.permute.xlu0 %226
    %v229 = vsel %vm219, %v223, 0.0
    %v230 = vsel %vm220, %v227, 0.0
    %v231 = vadd.f32 %v211, %v229
    %v232 = vadd.f32 %v212, %v230
    %233 = vset.pattern.permute.xlu0 4
    %234 = vperm.xlu0 %233, %v131
    %v235 = vpop.permute.xlu0 %234
    %236 = vset.pattern.permute.xlu0 4
    %237 = vperm.xlu0 %236, %v132
    %v238 = vpop.permute.xlu0 %237
    %vm239 = vcmp.eq.s32.totalorder %v235, %v24
    %vm240 = vcmp.eq.s32.totalorder %v238, %v24
    %241 = vset.pattern.permute.xlu0 4
    %242 = vperm.xlu0 %241, %v133
    %v243 = vpop.permute.xlu0 %242
    %245 = vset.pattern.permute.xlu0 4
    %246 = vperm.xlu0 %245, %v134
    %v247 = vpop.permute.xlu0 %246
    %v249 = vsel %vm239, %v243, 0.0
    %v250 = vsel %vm240, %v247, 0.0
    %v251 = vadd.f32 %v231, %v249
    %v252 = vadd.f32 %v232, %v250
    %253 = vmatprep.subr.mxu0 0.0
    %254 = vmatpush1.msra.mxu0 %v150
    %255 = vmatprep.subr.mxu0 0.0
    %256 = vmatpush1.msra.mxu0 %v149
    %257 = vmatprep.subr.mxu0 0.0
    %258 = vmatpush1.msra.mxu0 %v148
    %259 = vmatprep.subr.mxu0 0.0
    %260 = vmatpush1.msra.mxu0 %v147
    %261 = vmatprep.subr.mxu0 0.0
    %262 = vmatpush1.msra.mxu0 %v146
    %263 = vmatprep.subr.mxu0 0.0
    %264 = vmatpush1.msra.mxu0 %v145
    %265 = vmatprep.subr.mxu0 0.0
    %266 = vmatpush1.msra.mxu0 %v144
    %267 = vmatprep.subr.mxu0 0.0
    %268 = vmatpush1.msra.mxu0 %v143
    %269 = vmatprep.subr.mxu0 0.0
    %270 = vmatpush1.msra.mxu0 %v142
    %271 = vmatprep.subr.mxu0 0.0
    %272 = vmatpush1.msra.mxu0 %v141
    %273 = vmatprep.subr.mxu0 0.0
    %274 = vmatpush1.msra.mxu0 %v140
    %275 = vmatprep.subr.mxu0 0.0
    %276 = vmatpush1.msra.mxu0 %v139
    %277 = vmatprep.subr.mxu0 0.0
    %278 = vmatpush1.msra.mxu0 %v138
    %279 = vmatprep.subr.mxu0 0.0
    %280 = vmatpush1.msra.mxu0 %v137
    %281 = vmatprep.subr.mxu0 0.0
    %282 = vmatpush1.msra.mxu0 %v136
    %283 = vmatprep.subr.mxu0 0.0
    %284 = vmatpush1.msra.mxu0 %v135
    %285 = vmatprep.subr.mxu0 0.0
    %286 = vmatpush2.msra.mxu0 0.0
    %287 = vmatprep.subr.mxu0 0.0
    %288 = vmatpush2.msra.mxu0 0.0
    %289 = vmatprep.subr.mxu0 0.0
    %290 = vmatpush2.msra.mxu0 0.0
    %291 = vmatprep.subr.mxu0 0.0
    %292 = vmatpush2.msra.mxu0 0.0
    %293 = vmatprep.subr.mxu0 0.0
    %294 = vmatpush2.msra.mxu0 0.0
    %295 = vmatprep.subr.mxu0 0.0
    %296 = vmatpush2.msra.mxu0 0.0
    %297 = vmatprep.subr.mxu0 0.0
    %298 = vmatpush2.msra.mxu0 0.0
    %299 = vmatprep.subr.mxu0 0.0
    %300 = vmatpush2.msra.mxu0 0.0
    %301 = vmatprep.subr.mxu0 0.0
    %302 = vmatpush2.msra.mxu0 0.0
    %303 = vmatprep.subr.mxu0 0.0
    %304 = vmatpush2.msra.mxu0 0.0
    %305 = vmatprep.subr.mxu0 0.0
    %306 = vmatpush2.msra.mxu0 0.0
    %307 = vmatprep.subr.mxu0 0.0
    %308 = vmatpush2.msra.mxu0 0.0
    %309 = vmatprep.subr.mxu0 0.0
    %310 = vmatpush2.msra.mxu0 0.0
    %311 = vmatprep.subr.mxu0 0.0
    %312 = vmatpush2.msra.mxu0 0.0
    %313 = vmatprep.subr.mxu0 0.0
    %314 = vmatpush2.msra.mxu0 0.0
    %315 = vmatprep.subr.mxu0 0.0
    %316 = vmatpush2.msra.mxu0 0.0
    %317 = vmatprep.mubr.f32.mxu0 0.0
    %318 = vmatmul.mubr.f32.gmra.mxu0 %v251
    %v319 = vpop.f32.mrf.mxu0
    %v320 = vadd.f32 0.0, %v319
    %v321 = vpop.f32.mrf.mxu0
    %322 = vmatprep.mubr.f32.mxu0 0.0
    %323 = vmatmul.mubr.f32.gmra.mxu0 %v252
    %v324 = vpop.f32.mrf.mxu0
    %v325 = vadd.f32 0.0, %v324
    %v326 = vpop.f32.mrf.mxu0
    %327 = vdwg.mxu0
    %330 = vrot.lane.b32.xlu0 %v320, 32
    %v331 = vpop.permute.xlu0 %330
    %332 = vrot.lane.b32.xlu0 %v325, 32
    %v333 = vpop.permute.xlu0 %332
    %vm336 = vcmask 392448
    %337 = vst.msk [vmem:[#allocation2] sm:$0xff] %vm336, %v331
    %338 = vst.msk [vmem:[#allocation2 + $0x8] sm:$0xff] %vm336, %v333
    %339 = vset.pattern.permute.xlu0 5
    %340 = vperm.xlu0 %339, %v131
    %v341 = vpop.permute.xlu0 %340
    %342 = vset.pattern.permute.xlu0 5
    %343 = vperm.xlu0 %342, %v132
    %v344 = vpop.permute.xlu0 %343
    %vm345 = vcmp.eq.s32.totalorder %v341, %v24
    %vm346 = vcmp.eq.s32.totalorder %v344, %v24
    %347 = vset.pattern.permute.xlu0 5
    %348 = vperm.xlu0 %347, %v133
    %v349 = vpop.permute.xlu0 %348
    %351 = vset.pattern.permute.xlu0 5
    %352 = vperm.xlu0 %351, %v134
    %v353 = vpop.permute.xlu0 %352
    %v355 = vsel %vm345, %v349, 0.0
    %v356 = vsel %vm346, %v353, 0.0
    %v357 = vadd.f32 %v355, 0.0
    %v358 = vadd.f32 %v356, 0.0
    %359 = vset.pattern.permute.xlu0 6
    %360 = vperm.xlu0 %359, %v131
    %v361 = vpop.permute.xlu0 %360
    %362 = vset.pattern.permute.xlu0 6
    %363 = vperm.xlu0 %362, %v132
    %v364 = vpop.permute.xlu0 %363
    %vm365 = vcmp.eq.s32.totalorder %v361, %v24
    %vm366 = vcmp.eq.s32.totalorder %v364, %v24
    %367 = vset.pattern.permute.xlu0 6
    %368 = vperm.xlu0 %367, %v133
    %v369 = vpop.permute.xlu0 %368
    %371 = vset.pattern.permute.xlu0 6
    %372 = vperm.xlu0 %371, %v134
    %v373 = vpop.permute.xlu0 %372
    %v375 = vsel %vm365, %v369, 0.0
    %v376 = vsel %vm366, %v373, 0.0
    %v377 = vadd.f32 %v357, %v375
    %v378 = vadd.f32 %v358, %v376
    %379 = vset.pattern.permute.xlu0 7
    %380 = vperm.xlu0 %379, %v131
    %v381 = vpop.permute.xlu0 %380
    %382 = vset.pattern.permute.xlu0 7
    %383 = vperm.xlu0 %382, %v132
    %v384 = vpop.permute.xlu0 %383
    %vm385 = vcmp.eq.s32.totalorder %v381, %v24
    %vm386 = vcmp.eq.s32.totalorder %v384, %v24
    %387 = vset.pattern.permute.xlu0 7
    %388 = vperm.xlu0 %387, %v133
    %v389 = vpop.permute.xlu0 %388
    %391 = vset.pattern.permute.xlu0 7
    %392 = vperm.xlu0 %391, %v134
    %v393 = vpop.permute.xlu0 %392
    %v395 = vsel %vm385, %v389, 0.0
    %v396 = vsel %vm386, %v393, 0.0
    %v397 = vadd.f32 %v377, %v395
    %v398 = vadd.f32 %v378, %v396
    %399 = vset.pattern.permute.xlu0 8
    %400 = vperm.xlu0 %399, %v131
    %v401 = vpop.permute.xlu0 %400
    %402 = vset.pattern.permute.xlu0 8
    %403 = vperm.xlu0 %402, %v132
    %v404 = vpop.permute.xlu0 %403
    %vm405 = vcmp.eq.s32.totalorder %v401, %v24
    %vm406 = vcmp.eq.s32.totalorder %v404, %v24
    %407 = vset.pattern.permute.xlu0 8
    %408 = vperm.xlu0 %407, %v133
    %v409 = vpop.permute.xlu0 %408
    %411 = vset.pattern.permute.xlu0 8
    %412 = vperm.xlu0 %411, %v134
    %v413 = vpop.permute.xlu0 %412
    %v415 = vsel %vm405, %v409, 0.0
    %v416 = vsel %vm406, %v413, 0.0
    %v417 = vadd.f32 %v397, %v415
    %v418 = vadd.f32 %v398, %v416
    %419 = vset.pattern.permute.xlu0 9
    %420 = vperm.xlu0 %419, %v131
    %v421 = vpop.permute.xlu0 %420
    %422 = vset.pattern.permute.xlu0 9
    %423 = vperm.xlu0 %422, %v132
    %v424 = vpop.permute.xlu0 %423
    %vm425 = vcmp.eq.s32.totalorder %v421, %v24
    %vm426 = vcmp.eq.s32.totalorder %v424, %v24
    %427 = vset.pattern.permute.xlu0 9
    %428 = vperm.xlu0 %427, %v133
    %v429 = vpop.permute.xlu0 %428
    %431 = vset.pattern.permute.xlu0 9
    %432 = vperm.xlu0 %431, %v134
    %v433 = vpop.permute.xlu0 %432
    %v435 = vsel %vm425, %v429, 0.0
    %v436 = vsel %vm426, %v433, 0.0
    %v437 = vadd.f32 %v417, %v435
    %v438 = vadd.f32 %v418, %v436
    %439 = vmatprep.subr.mxu0 0.0
    %440 = vmatpush1.msra.mxu0 %v150
    %441 = vmatprep.subr.mxu0 0.0
    %442 = vmatpush1.msra.mxu0 %v149
    %443 = vmatprep.subr.mxu0 0.0
    %444 = vmatpush1.msra.mxu0 %v148
    %445 = vmatprep.subr.mxu0 0.0
    %446 = vmatpush1.msra.mxu0 %v147
    %447 = vmatprep.subr.mxu0 0.0
    %448 = vmatpush1.msra.mxu0 %v146
    %449 = vmatprep.subr.mxu0 0.0
    %450 = vmatpush1.msra.mxu0 %v145
    %451 = vmatprep.subr.mxu0 0.0
    %452 = vmatpush1.msra.mxu0 %v144
    %453 = vmatprep.subr.mxu0 0.0
    %454 = vmatpush1.msra.mxu0 %v143
    %455 = vmatprep.subr.mxu0 0.0
    %456 = vmatpush1.msra.mxu0 %v142
    %457 = vmatprep.subr.mxu0 0.0
    %458 = vmatpush1.msra.mxu0 %v141
    %459 = vmatprep.subr.mxu0 0.0
    %460 = vmatpush1.msra.mxu0 %v140
    %461 = vmatprep.subr.mxu0 0.0
    %462 = vmatpush1.msra.mxu0 %v139
    %463 = vmatprep.subr.mxu0 0.0
    %464 = vmatpush1.msra.mxu0 %v138
    %465 = vmatprep.subr.mxu0 0.0
    %466 = vmatpush1.msra.mxu0 %v137
    %467 = vmatprep.subr.mxu0 0.0
    %468 = vmatpush1.msra.mxu0 %v136
    %469 = vmatprep.subr.mxu0 0.0
    %470 = vmatpush1.msra.mxu0 %v135
    %471 = vmatprep.subr.mxu0 0.0
    %472 = vmatpush2.msra.mxu0 0.0
    %473 = vmatprep.subr.mxu0 0.0
    %474 = vmatpush2.msra.mxu0 0.0
    %475 = vmatprep.subr.mxu0 0.0
    %476 = vmatpush2.msra.mxu0 0.0
    %477 = vmatprep.subr.mxu0 0.0
    %478 = vmatpush2.msra.mxu0 0.0
    %479 = vmatprep.subr.mxu0 0.0
    %480 = vmatpush2.msra.mxu0 0.0
    %481 = vmatprep.subr.mxu0 0.0
    %482 = vmatpush2.msra.mxu0 0.0
    %483 = vmatprep.subr.mxu0 0.0
    %484 = vmatpush2.msra.mxu0 0.0
    %485 = vmatprep.subr.mxu0 0.0
    %486 = vmatpush2.msra.mxu0 0.0
    %487 = vmatprep.subr.mxu0 0.0
    %488 = vmatpush2.msra.mxu0 0.0
    %489 = vmatprep.subr.mxu0 0.0
    %490 = vmatpush2.msra.mxu0 0.0
    %491 = vmatprep.subr.mxu0 0.0
    %492 = vmatpush2.msra.mxu0 0.0
    %493 = vmatprep.subr.mxu0 0.0
    %494 = vmatpush2.msra.mxu0 0.0
    %495 = vmatprep.subr.mxu0 0.0
    %496 = vmatpush2.msra.mxu0 0.0
    %497 = vmatprep.subr.mxu0 0.0
    %498 = vmatpush2.msra.mxu0 0.0
    %499 = vmatprep.subr.mxu0 0.0
    %500 = vmatpush2.msra.mxu0 0.0
    %501 = vmatprep.subr.mxu0 0.0
    %502 = vmatpush2.msra.mxu0 0.0
    %503 = vmatprep.mubr.f32.mxu0 0.0
    %504 = vmatmul.mubr.f32.gmra.mxu0 %v437
    %v505 = vpop.f32.mrf.mxu0
    %v506 = vadd.f32 0.0, %v505
    %v507 = vpop.f32.mrf.mxu0
    %508 = vmatprep.mubr.f32.mxu0 0.0
    %509 = vmatmul.mubr.f32.gmra.mxu0 %v438
    %v510 = vpop.f32.mrf.mxu0
    %v511 = vadd.f32 0.0, %v510
    %v512 = vpop.f32.mrf.mxu0
    %513 = vdwg.mxu0
    %516 = vrot.lane.b32.xlu0 %v506, 48
    %v517 = vpop.permute.xlu0 %516
    %518 = vrot.lane.b32.xlu0 %v511, 48
    %v519 = vpop.permute.xlu0 %518
    %vm522 = vcmask 523648
    %523 = vst.msk [vmem:[#allocation2] sm:$0xff] %vm522, %v517
    %524 = vst.msk [vmem:[#allocation2 + $0x8] sm:$0xff] %vm522, %v519
    %525 = vset.pattern.permute.xlu0 10
    %526 = vperm.xlu0 %525, %v131
    %v527 = vpop.permute.xlu0 %526
    %528 = vset.pattern.permute.xlu0 10
    %529 = vperm.xlu0 %528, %v132
    %v530 = vpop.permute.xlu0 %529
    %vm531 = vcmp.eq.s32.totalorder %v527, %v24
    %vm532 = vcmp.eq.s32.totalorder %v530, %v24
    %533 = vset.pattern.permute.xlu0 10
    %534 = vperm.xlu0 %533, %v133
    %v535 = vpop.permute.xlu0 %534
    %537 = vset.pattern.permute.xlu0 10
    %538 = vperm.xlu0 %537, %v134
    %v539 = vpop.permute.xlu0 %538
    %v541 = vsel %vm531, %v535, 0.0
    %v542 = vsel %vm532, %v539, 0.0
    %v543 = vadd.f32 %v541, 0.0
    %v544 = vadd.f32 %v542, 0.0
    %545 = vset.pattern.permute.xlu0 11
    %546 = vperm.xlu0 %545, %v131
    %v547 = vpop.permute.xlu0 %546
    %548 = vset.pattern.permute.xlu0 11
    %549 = vperm.xlu0 %548, %v132
    %v550 = vpop.permute.xlu0 %549
    %vm551 = vcmp.eq.s32.totalorder %v547, %v24
    %vm552 = vcmp.eq.s32.totalorder %v550, %v24
    %553 = vset.pattern.permute.xlu0 11
    %554 = vperm.xlu0 %553, %v133
    %v555 = vpop.permute.xlu0 %554
    %557 = vset.pattern.permute.xlu0 11
    %558 = vperm.xlu0 %557, %v134
    %v559 = vpop.permute.xlu0 %558
    %v561 = vsel %vm551, %v555, 0.0
    %v562 = vsel %vm552, %v559, 0.0
    %v563 = vadd.f32 %v543, %v561
    %v564 = vadd.f32 %v544, %v562
    %565 = vset.pattern.permute.xlu0 12
    %566 = vperm.xlu0 %565, %v131
    %v567 = vpop.permute.xlu0 %566
    %568 = vset.pattern.permute.xlu0 12
    %569 = vperm.xlu0 %568, %v132
    %v570 = vpop.permute.xlu0 %569
    %vm571 = vcmp.eq.s32.totalorder %v567, %v24
    %vm572 = vcmp.eq.s32.totalorder %v570, %v24
    %573 = vset.pattern.permute.xlu0 12
    %574 = vperm.xlu0 %573, %v133
    %v575 = vpop.permute.xlu0 %574
    %577 = vset.pattern.permute.xlu0 12
    %578 = vperm.xlu0 %577, %v134
    %v579 = vpop.permute.xlu0 %578
    %v581 = vsel %vm571, %v575, 0.0
    %v582 = vsel %vm572, %v579, 0.0
    %v583 = vadd.f32 %v563, %v581
    %v584 = vadd.f32 %v564, %v582
    %585 = vset.pattern.permute.xlu0 13
    %586 = vperm.xlu0 %585, %v131
    %v587 = vpop.permute.xlu0 %586
    %588 = vset.pattern.permute.xlu0 13
    %589 = vperm.xlu0 %588, %v132
    %v590 = vpop.permute.xlu0 %589
    %vm591 = vcmp.eq.s32.totalorder %v587, %v24
    %vm592 = vcmp.eq.s32.totalorder %v590, %v24
    %593 = vset.pattern.permute.xlu0 13
    %594 = vperm.xlu0 %593, %v133
    %v595 = vpop.permute.xlu0 %594
    %597 = vset.pattern.permute.xlu0 13
    %598 = vperm.xlu0 %597, %v134
    %v599 = vpop.permute.xlu0 %598
    %v601 = vsel %vm591, %v595, 0.0
    %v602 = vsel %vm592, %v599, 0.0
    %v603 = vadd.f32 %v583, %v601
    %v604 = vadd.f32 %v584, %v602
    %605 = vset.pattern.permute.xlu0 14
    %606 = vperm.xlu0 %605, %v131
    %v607 = vpop.permute.xlu0 %606
    %608 = vset.pattern.permute.xlu0 14
    %609 = vperm.xlu0 %608, %v132
    %v610 = vpop.permute.xlu0 %609
    %vm611 = vcmp.eq.s32.totalorder %v607, %v24
    %vm612 = vcmp.eq.s32.totalorder %v610, %v24
    %613 = vset.pattern.permute.xlu0 14
    %614 = vperm.xlu0 %613, %v133
    %v615 = vpop.permute.xlu0 %614
    %617 = vset.pattern.permute.xlu0 14
    %618 = vperm.xlu0 %617, %v134
    %v619 = vpop.permute.xlu0 %618
    %v621 = vsel %vm611, %v615, 0.0
    %v622 = vsel %vm612, %v619, 0.0
    %v623 = vadd.f32 %v603, %v621
    %v624 = vadd.f32 %v604, %v622
    %625 = vmatprep.subr.mxu0 0.0
    %626 = vmatpush1.msra.mxu0 %v150
    %627 = vmatprep.subr.mxu0 0.0
    %628 = vmatpush1.msra.mxu0 %v149
    %629 = vmatprep.subr.mxu0 0.0
    %630 = vmatpush1.msra.mxu0 %v148
    %631 = vmatprep.subr.mxu0 0.0
    %632 = vmatpush1.msra.mxu0 %v147
    %633 = vmatprep.subr.mxu0 0.0
    %634 = vmatpush1.msra.mxu0 %v146
    %635 = vmatprep.subr.mxu0 0.0
    %636 = vmatpush1.msra.mxu0 %v145
    %637 = vmatprep.subr.mxu0 0.0
    %638 = vmatpush1.msra.mxu0 %v144
    %639 = vmatprep.subr.mxu0 0.0
    %640 = vmatpush1.msra.mxu0 %v143
    %641 = vmatprep.subr.mxu0 0.0
    %642 = vmatpush1.msra.mxu0 %v142
    %643 = vmatprep.subr.mxu0 0.0
    %644 = vmatpush1.msra.mxu0 %v141
    %645 = vmatprep.subr.mxu0 0.0
    %646 = vmatpush1.msra.mxu0 %v140
    %647 = vmatprep.subr.mxu0 0.0
    %648 = vmatpush1.msra.mxu0 %v139
    %649 = vmatprep.subr.mxu0 0.0
    %650 = vmatpush1.msra.mxu0 %v138
    %651 = vmatprep.subr.mxu0 0.0
    %652 = vmatpush1.msra.mxu0 %v137
    %653 = vmatprep.subr.mxu0 0.0
    %654 = vmatpush1.msra.mxu0 %v136
    %655 = vmatprep.subr.mxu0 0.0
    %656 = vmatpush1.msra.mxu0 %v135
    %657 = vmatprep.subr.mxu0 0.0
    %658 = vmatpush2.msra.mxu0 0.0
    %659 = vmatprep.subr.mxu0 0.0
    %660 = vmatpush2.msra.mxu0 0.0
    %661 = vmatprep.subr.mxu0 0.0
    %662 = vmatpush2.msra.mxu0 0.0
    %663 = vmatprep.subr.mxu0 0.0
    %664 = vmatpush2.msra.mxu0 0.0
    %665 = vmatprep.subr.mxu0 0.0
    %666 = vmatpush2.msra.mxu0 0.0
    %667 = vmatprep.subr.mxu0 0.0
    %668 = vmatpush2.msra.mxu0 0.0
    %669 = vmatprep.subr.mxu0 0.0
    %670 = vmatpush2.msra.mxu0 0.0
    %671 = vmatprep.subr.mxu0 0.0
    %672 = vmatpush2.msra.mxu0 0.0
    %673 = vmatprep.subr.mxu0 0.0
    %674 = vmatpush2.msra.mxu0 0.0
    %675 = vmatprep.subr.mxu0 0.0
    %676 = vmatpush2.msra.mxu0 0.0
    %677 = vmatprep.subr.mxu0 0.0
    %678 = vmatpush2.msra.mxu0 0.0
    %679 = vmatprep.subr.mxu0 0.0
    %680 = vmatpush2.msra.mxu0 0.0
    %681 = vmatprep.subr.mxu0 0.0
    %682 = vmatpush2.msra.mxu0 0.0
    %683 = vmatprep.subr.mxu0 0.0
    %684 = vmatpush2.msra.mxu0 0.0
    %685 = vmatprep.subr.mxu0 0.0
    %686 = vmatpush2.msra.mxu0 0.0
    %687 = vmatprep.subr.mxu0 0.0
    %688 = vmatpush2.msra.mxu0 0.0
    %689 = vmatprep.mubr.f32.mxu0 0.0
    %690 = vmatmul.mubr.f32.gmra.mxu0 %v623
    %v691 = vpop.f32.mrf.mxu0
    %v692 = vadd.f32 0.0, %v691
    %v693 = vpop.f32.mrf.mxu0
    %694 = vmatprep.mubr.f32.mxu0 0.0
    %695 = vmatmul.mubr.f32.gmra.mxu0 %v624
    %v696 = vpop.f32.mrf.mxu0
    %v697 = vadd.f32 0.0, %v696
    %v698 = vpop.f32.mrf.mxu0
    %699 = vdwg.mxu0
    %702 = vrot.lane.b32.xlu0 %v692, 64
    %v703 = vpop.permute.xlu0 %702
    %704 = vrot.lane.b32.xlu0 %v697, 64
    %v705 = vpop.permute.xlu0 %704
    %vm708 = vcmask 654848
    %709 = vst.msk [vmem:[#allocation2] sm:$0xff] %vm708, %v703
    %710 = vst.msk [vmem:[#allocation2 + $0x8] sm:$0xff] %vm708, %v705
    %711 = vset.pattern.permute.xlu0 15
    %712 = vperm.xlu0 %711, %v131
    %v713 = vpop.permute.xlu0 %712
    %714 = vset.pattern.permute.xlu0 15
    %715 = vperm.xlu0 %714, %v132
    %v716 = vpop.permute.xlu0 %715
    %vm717 = vcmp.eq.s32.totalorder %v713, %v24
    %vm718 = vcmp.eq.s32.totalorder %v716, %v24
    %719 = vset.pattern.permute.xlu0 15
    %720 = vperm.xlu0 %719, %v133
    %v721 = vpop.permute.xlu0 %720
    %723 = vset.pattern.permute.xlu0 15
    %724 = vperm.xlu0 %723, %v134
    %v725 = vpop.permute.xlu0 %724
    %v727 = vsel %vm717, %v721, 0.0
    %v728 = vsel %vm718, %v725, 0.0
    %v729 = vadd.f32 %v727, 0.0
    %v730 = vadd.f32 %v728, 0.0
    %731 = vset.pattern.permute.xlu0 16
    %732 = vperm.xlu0 %731, %v131
    %v733 = vpop.permute.xlu0 %732
    %734 = vset.pattern.permute.xlu0 16
    %735 = vperm.xlu0 %734, %v132
    %v736 = vpop.permute.xlu0 %735
    %vm737 = vcmp.eq.s32.totalorder %v733, %v24
    %vm738 = vcmp.eq.s32.totalorder %v736, %v24
    %739 = vset.pattern.permute.xlu0 16
    %740 = vperm.xlu0 %739, %v133
    %v741 = vpop.permute.xlu0 %740
    %743 = vset.pattern.permute.xlu0 16
    %744 = vperm.xlu0 %743, %v134
    %v745 = vpop.permute.xlu0 %744
    %v747 = vsel %vm737, %v741, 0.0
    %v748 = vsel %vm738, %v745, 0.0
    %v749 = vadd.f32 %v729, %v747
    %v750 = vadd.f32 %v730, %v748
    %751 = vset.pattern.permute.xlu0 17
    %752 = vperm.xlu0 %751, %v131
    %v753 = vpop.permute.xlu0 %752
    %754 = vset.pattern.permute.xlu0 17
    %755 = vperm.xlu0 %754, %v132
    %v756 = vpop.permute.xlu0 %755
    %vm757 = vcmp.eq.s32.totalorder %v753, %v24
    %vm758 = vcmp.eq.s32.totalorder %v756, %v24
    %759 = vset.pattern.permute.xlu0 17
    %760 = vperm.xlu0 %759, %v133
    %v761 = vpop.permute.xlu0 %760
    %763 = vset.pattern.permute.xlu0 17
    %764 = vperm.xlu0 %763, %v134
    %v765 = vpop.permute.xlu0 %764
    %v767 = vsel %vm757, %v761, 0.0
    %v768 = vsel %vm758, %v765, 0.0
    %v769 = vadd.f32 %v749, %v767
    %v770 = vadd.f32 %v750, %v768
    %771 = vset.pattern.permute.xlu0 18
    %772 = vperm.xlu0 %771, %v131
    %v773 = vpop.permute.xlu0 %772
    %774 = vset.pattern.permute.xlu0 18
    %775 = vperm.xlu0 %774, %v132
    %v776 = vpop.permute.xlu0 %775
    %vm777 = vcmp.eq.s32.totalorder %v773, %v24
    %vm778 = vcmp.eq.s32.totalorder %v776, %v24
    %779 = vset.pattern.permute.xlu0 18
    %780 = vperm.xlu0 %779, %v133
    %v781 = vpop.permute.xlu0 %780
    %783 = vset.pattern.permute.xlu0 18
    %784 = vperm.xlu0 %783, %v134
    %v785 = vpop.permute.xlu0 %784
    %v787 = vsel %vm777, %v781, 0.0
    %v788 = vsel %vm778, %v785, 0.0
    %v789 = vadd.f32 %v769, %v787
    %v790 = vadd.f32 %v770, %v788
    %791 = vset.pattern.permute.xlu0 19
    %792 = vperm.xlu0 %791, %v131
    %v793 = vpop.permute.xlu0 %792
    %794 = vset.pattern.permute.xlu0 19
    %795 = vperm.xlu0 %794, %v132
    %v796 = vpop.permute.xlu0 %795
    %vm797 = vcmp.eq.s32.totalorder %v793, %v24
    %vm798 = vcmp.eq.s32.totalorder %v796, %v24
    %799 = vset.pattern.permute.xlu0 19
    %800 = vperm.xlu0 %799, %v133
    %v801 = vpop.permute.xlu0 %800
    %803 = vset.pattern.permute.xlu0 19
    %804 = vperm.xlu0 %803, %v134
    %v805 = vpop.permute.xlu0 %804
    %v807 = vsel %vm797, %v801, 0.0
    %v808 = vsel %vm798, %v805, 0.0
    %v809 = vadd.f32 %v789, %v807
    %v810 = vadd.f32 %v790, %v808
    %811 = vmatprep.subr.mxu0 0.0
    %812 = vmatpush1.msra.mxu0 %v150
    %813 = vmatprep.subr.mxu0 0.0
    %814 = vmatpush1.msra.mxu0 %v149
    %815 = vmatprep.subr.mxu0 0.0
    %816 = vmatpush1.msra.mxu0 %v148
    %817 = vmatprep.subr.mxu0 0.0
    %818 = vmatpush1.msra.mxu0 %v147
    %819 = vmatprep.subr.mxu0 0.0
    %820 = vmatpush1.msra.mxu0 %v146
    %821 = vmatprep.subr.mxu0 0.0
    %822 = vmatpush1.msra.mxu0 %v145
    %823 = vmatprep.subr.mxu0 0.0
    %824 = vmatpush1.msra.mxu0 %v144
    %825 = vmatprep.subr.mxu0 0.0
    %826 = vmatpush1.msra.mxu0 %v143
    %827 = vmatprep.subr.mxu0 0.0
    %828 = vmatpush1.msra.mxu0 %v142
    %829 = vmatprep.subr.mxu0 0.0
    %830 = vmatpush1.msra.mxu0 %v141
    %831 = vmatprep.subr.mxu0 0.0
    %832 = vmatpush1.msra.mxu0 %v140
    %833 = vmatprep.subr.mxu0 0.0
    %834 = vmatpush1.msra.mxu0 %v139
    %835 = vmatprep.subr.mxu0 0.0
    %836 = vmatpush1.msra.mxu0 %v138
    %837 = vmatprep.subr.mxu0 0.0
    %838 = vmatpush1.msra.mxu0 %v137
    %839 = vmatprep.subr.mxu0 0.0
    %840 = vmatpush1.msra.mxu0 %v136
    %841 = vmatprep.subr.mxu0 0.0
    %842 = vmatpush1.msra.mxu0 %v135
    %843 = vmatprep.subr.mxu0 0.0
    %844 = vmatpush2.msra.mxu0 0.0
    %845 = vmatprep.subr.mxu0 0.0
    %846 = vmatpush2.msra.mxu0 0.0
    %847 = vmatprep.subr.mxu0 0.0
    %848 = vmatpush2.msra.mxu0 0.0
    %849 = vmatprep.subr.mxu0 0.0
    %850 = vmatpush2.msra.mxu0 0.0
    %851 = vmatprep.subr.mxu0 0.0
    %852 = vmatpush2.msra.mxu0 0.0
    %853 = vmatprep.subr.mxu0 0.0
    %854 = vmatpush2.msra.mxu0 0.0
    %855 = vmatprep.subr.mxu0 0.0
    %856 = vmatpush2.msra.mxu0 0.0
    %857 = vmatprep.subr.mxu0 0.0
    %858 = vmatpush2.msra.mxu0 0.0
    %859 = vmatprep.subr.mxu0 0.0
    %860 = vmatpush2.msra.mxu0 0.0
    %861 = vmatprep.subr.mxu0 0.0
    %862 = vmatpush2.msra.mxu0 0.0
    %863 = vmatprep.subr.mxu0 0.0
    %864 = vmatpush2.msra.mxu0 0.0
    %865 = vmatprep.subr.mxu0 0.0
    %866 = vmatpush2.msra.mxu0 0.0
    %867 = vmatprep.subr.mxu0 0.0
    %868 = vmatpush2.msra.mxu0 0.0
    %869 = vmatprep.subr.mxu0 0.0
    %870 = vmatpush2.msra.mxu0 0.0
    %871 = vmatprep.subr.mxu0 0.0
    %872 = vmatpush2.msra.mxu0 0.0
    %873 = vmatprep.subr.mxu0 0.0
    %874 = vmatpush2.msra.mxu0 0.0
    %875 = vmatprep.mubr.f32.mxu0 0.0
    %876 = vmatmul.mubr.f32.gmra.mxu0 %v809
    %v877 = vpop.f32.mrf.mxu0
    %v878 = vadd.f32 0.0, %v877
    %v879 = vpop.f32.mrf.mxu0
    %880 = vmatprep.mubr.f32.mxu0 0.0
    %881 = vmatmul.mubr.f32.gmra.mxu0 %v810
    %v882 = vpop.f32.mrf.mxu0
    %v883 = vadd.f32 0.0, %v882
    %v884 = vpop.f32.mrf.mxu0
    %885 = vdwg.mxu0
    %888 = vrot.lane.b32.xlu0 %v878, 80
    %v889 = vpop.permute.xlu0 %888
    %890 = vrot.lane.b32.xlu0 %v883, 80
    %v891 = vpop.permute.xlu0 %890
    %vm894 = vcmask 786048
    %895 = vst.msk [vmem:[#allocation2] sm:$0xff] %vm894, %v889
    %896 = vst.msk [vmem:[#allocation2 + $0x8] sm:$0xff] %vm894, %v891
    %vm897 = vcmask 1048320
    %898 = vst.msk [vmem:[#allocation2] sm:$0xff] %vm897, 0.0
    %899 = vst.msk [vmem:[#allocation2 + $0x8] sm:$0xff] %vm897, 0.0
    // Predicated region
    $region22: #{tpu_custom_call.1} parent=1 // pred_check
      _
    $region23: #{tpu_custom_call.1} parent=1 // pred_check_branch
      %901 = sbr.rel (0) target = $region25
    $region24: #{tpu_custom_call.1} parent=1 // pred_region
      %s903 = ssub.s32 256, 256
      %904 = vsyncadd [#allocation3], %s903
      %s905 = sshll.u32 [#allocation2], 4
      %s906 = int_to_ptr.vmem [resolvable:$true] %s905
      %911 = dma.vmem_to_hbm [thread:$0]  %s906, 256, %s5, [#allocation3], 128, 128, 8
    $region25: #{tpu_custom_call.1} parent=1 // pred_fallthru
      _
    // Predicated region
    $region26: #{tpu_custom_call.1} parent=1 // pred_check
      _
    $region27: #{tpu_custom_call.1} parent=1 // pred_check_branch
      %913 = sbr.rel (0) target = $region29
    $region28: #{tpu_custom_call.1} parent=1 // pred_region
      %914 = dma.done [#allocation3], 256
    $region29: #{tpu_custom_call.1} parent=1 // pred_fallthru
      _
    %915 = vsyncpa [#allocation3], 1

</llo_original>
